<compile_context>
chip_gen: v7x
topology: tpu7x:2x2x1
jax: 0.10.0
libtpu: 0.0.40
codegen_flags: <defaults>
</compile_context>

<pallas_src>
import jax
import jax.numpy as jnp
from jax.experimental import pallas as pl
from jax.experimental.pallas import tpu as pltpu

BATCH_PAD = 8      # sublane tile
LANE = 128         # lane tile


def rnn_wave_kernel(x_ref, wih0_ref, wbig_ref, btab_ref, wfc_ref, bfc_ref, out_ref):
    """Whole (tiny) model in one grid-less invocation; everything resident in VMEM.

    Shapes (all static):
      x_ref    : (T*8, Din)          time-major, batch zero-padded to 8 sublanes
      wih0_ref : (Din, LHp)          layer-0 input weights, transposed, lane-padded
      wbig_ref : (LHp, LHp) bf16     block-packed recurrence weights
      btab_ref : ((T+L-1)*8, LHp)    per-wave bias injection, pre-broadcast over batch
      wfc_ref  : (LHp, Op)           fc weights; rows outside the last layer block = 0
      bfc_ref  : (1, Op)
      out_ref  : (8, Op)
    """
    TB = x_ref.shape[0]
    LHp = wbig_ref.shape[0]
    Bp = out_ref.shape[0]
    T = TB // Bp
    num_waves = btab_ref.shape[0] // Bp

    # Hoisted layer-0 input projection for all time steps (single matmul, off the
    # serial chain).  Lane-padded so each per-wave injection is a full-tile add.
    pre0 = jnp.dot(x_ref[...], wih0_ref[...],
                   preferred_element_type=jnp.float32)           # (T*8, LHp)

    w_big = wbig_ref[...]                                        # bf16, held in vregs
    state = jnp.zeros((Bp, LHp), jnp.float32)

    # T + L - 1 waves; wave s produces h[l][t] for every layer l with t = s - l valid.
    for s in range(num_waves):
        acc = jnp.dot(state.astype(jnp.bfloat16), w_big,
                      preferred_element_type=jnp.float32)        # (8, LHp)
        acc = acc + btab_ref[s * Bp:(s + 1) * Bp, :]             # masked per-wave biases
        if s < T:
            acc = acc + pre0[s * Bp:(s + 1) * Bp, :]             # layer-0 input injection
        state = jnp.maximum(acc, 0.0)                            # f32 elementwise (v5e-safe)

    # fc: only the last layer's block contributes (all other rows of wfc are zero).
    out = jnp.dot(state, wfc_ref[...], preferred_element_type=jnp.float32) + bfc_ref[...]
    out_ref[...] = out.astype(out_ref.dtype)


def pack_params(params, seq_len):
    """One-time parameter transform (free: happens once at construction, not per call):
    fold b_ih+b_hh, build the block-packed wavefront weight / injection table, and
    pad everything to (8,128) tiles."""
    w_ih0, w_ihr, w_hh = params["w_ih0"], params["w_ihr"], params["w_hh"]
    b_fold = params["b_ih"] + params["b_hh"]                     # (L, H)
    w_fc, b_fc = params["w_fc"], params["b_fc"]

    L, H, _ = w_hh.shape
    Din = w_ih0.shape[0]
    O = w_fc.shape[1]
    T = seq_len
    LH = L * H
    LHp = LANE * pl.cdiv(LH, LANE)
    Op = 64 * pl.cdiv(O, 64)
    num_waves = T + L - 1

    # layer-0 input projection weights, lane-padded to the packed-state width.
    w_ih0p = jnp.zeros((Din, LHp), jnp.float32).at[:, :H].set(w_ih0)

    # Block-packed recurrence weights (bf16 MXU operands; f32 accumulation in-kernel).
    w_big = jnp.zeros((LHp, LHp), jnp.float32)
    for l in range(L):
        w_big = w_big.at[l * H:(l + 1) * H, l * H:(l + 1) * H].set(w_hh[l])
        if l >= 1:
            w_big = w_big.at[(l - 1) * H:l * H, l * H:(l + 1) * H].set(w_ihr[l - 1])
    w_big = w_big.astype(jnp.bfloat16)

    # Per-wave bias injection: zero for inactive (warm-up / drained) layer blocks,
    # pre-broadcast over the 8 padded batch sublanes so the in-kernel add is a plain
    # tile-aligned load (no broadcast inside the wave loop).
    btab = jnp.zeros((num_waves, BATCH_PAD, LHp), jnp.float32)
    for s in range(num_waves):
        for l in range(L):
            if 0 <= s - l <= T - 1:
                btab = btab.at[s, :, l * H:(l + 1) * H].set(b_fold[l])
    btab = btab.reshape(num_waves * BATCH_PAD, LHp)

    # fc weights placed in the last layer's block rows; output lane-padded (51 -> 64).
    w_fc_big = jnp.zeros((LHp, Op), jnp.float32).at[(L - 1) * H:L * H, :O].set(w_fc)
    b_fc_pad = jnp.zeros((1, Op), jnp.float32).at[:, :O].set(b_fc)

    return dict(w_ih0p=w_ih0p, w_big=w_big, bias_tbl=btab,
                w_fc_big=w_fc_big, b_fc_pad=b_fc_pad, seq_len=T, out_dim=O)


def net_forward(x, packed):
    B, T, Din = x.shape
    assert T == packed["seq_len"], "bias table was packed for a different seq_len"
    assert B <= BATCH_PAD, "shard batch over a grid axis if B grows beyond 8"
    O = packed["out_dim"]
    Op = packed["b_fc_pad"].shape[1]
    LHp = packed["w_big"].shape[0]
    num_waves = packed["bias_tbl"].shape[0] // BATCH_PAD

    # Layout plumbing only: time-major, batch zero-padded to a full sublane tile.
    x_tm = jnp.transpose(x, (1, 0, 2))
    x_tm = jnp.pad(x_tm, ((0, 0), (0, BATCH_PAD - B), (0, 0)))
    x_flat = x_tm.reshape(T * BATCH_PAD, Din)

    operands = (x_flat, packed["w_ih0p"], packed["w_big"], packed["bias_tbl"],
                packed["w_fc_big"], packed["b_fc_pad"])
    flops = 2 * (T * BATCH_PAD * Din * LHp
                 + num_waves * BATCH_PAD * LHp * LHp
                 + BATCH_PAD * LHp * Op)
    bytes_accessed = (sum(int(a.size) * a.dtype.itemsize for a in operands)
                      + BATCH_PAD * Op * 4)

    vmem = pl.BlockSpec(memory_space=pltpu.MemorySpace.VMEM)
    out_pad = pl.pallas_call(
        rnn_wave_kernel,
        out_shape=jax.ShapeDtypeStruct((BATCH_PAD, Op), jnp.float32),
        in_specs=[vmem] * 6,
        out_specs=vmem,
        cost_estimate=pl.CostEstimate(flops=flops, transcendentals=0,
                                      bytes_accessed=bytes_accessed),
    )(*operands)
    return out_pad[:B, :O]


def init_params(key, input_dim, hidden_dim, layer_dim, out_dim):
    """Deterministic init mimicking PyTorch's uniform(-1/sqrt(H), 1/sqrt(H))."""
    k_rnn = 1.0 / jnp.sqrt(jnp.float32(hidden_dim))
    k_fc = 1.0 / jnp.sqrt(jnp.float32(hidden_dim))
    keys = iter(jax.random.split(key, 4 * layer_dim + 2))

    def u(kk, shape, scale):
        return jax.random.uniform(kk, shape, jnp.float32, -scale, scale)

    # weights stored transposed: applied as (activations @ W)
    w_ih0 = u(next(keys), (input_dim, hidden_dim), k_rnn)
    w_ihr = jnp.stack([u(next(keys), (hidden_dim, hidden_dim), k_rnn)
                       for _ in range(layer_dim - 1)], axis=0)
    w_hh = jnp.stack([u(next(keys), (hidden_dim, hidden_dim), k_rnn)
                      for _ in range(layer_dim)], axis=0)
    b_ih = jnp.stack([u(next(keys), (hidden_dim,), k_rnn)
                      for _ in range(layer_dim)], axis=0)
    b_hh = jnp.stack([u(next(keys), (hidden_dim,), k_rnn)
                      for _ in range(layer_dim)], axis=0)
    w_fc = u(next(keys), (hidden_dim, out_dim), k_fc)
    b_fc = u(next(keys), (1, out_dim), k_fc)
    return dict(w_ih0=w_ih0, w_ihr=w_ihr, w_hh=w_hh,
                b_ih=b_ih, b_hh=b_hh, w_fc=w_fc, b_fc=b_fc)


def net_ref(x, params):
    """Pure-JAX f32 reference (identical math to the PyTorch module)."""
    L, H, _ = params["w_hh"].shape
    B, T, _ = x.shape
    inp = x
    for l in range(L):
        w_in = params["w_ih0"] if l == 0 else params["w_ihr"][l - 1]
        w_hh = params["w_hh"][l]
        b = params["b_ih"][l] + params["b_hh"][l]
        h = jnp.zeros((B, H), jnp.float32)
        outs = []
        for t in range(T):
            h = jnp.maximum(inp[:, t, :] @ w_in + h @ w_hh + b, 0.0)
            outs.append(h)
        inp = jnp.stack(outs, axis=1)
    return inp[:, -1, :] @ params["w_fc"] + params["b_fc"]


if __name__ == "__main__":
    # small shapes consistent with the module's forward:
    #   batch=2, seq_len=8, input_dim=4, hidden_dim=32, layers=3, out_dim=51
    B, T, D_IN, H, L, D_OUT = 2, 8, 4, 32, 3, 51

    root = jax.random.PRNGKey(0)
    kx, kp = jax.random.split(root)
    x = jax.random.normal(kx, (B, T, D_IN), jnp.float32)
    params = init_params(kp, D_IN, H, L, D_OUT)
    packed = pack_params(params, seq_len=T)   # one-time parameter transform

    out = net_forward(x, packed)
    out = jax.block_until_ready(out)

    ref = net_ref(x, params)
    assert out.shape == (B, D_OUT), out.shape
    # bf16 recurrence-matmul operands (f32 accumulate) inject O(1e-3) error per wave
    # on O(0.3)-magnitude activations over 10 waves -> tolerance relaxed vs. all-f32.
    assert jnp.allclose(out, ref, rtol=3e-2, atol=3e-2), \
        f"max abs diff {jnp.max(jnp.abs(out - ref))}"

    print("KERNEL_OK")
</pallas_src>

<mosaic_0001>
module attributes {stable_mosaic.version = 11 : i64} {
  func.func @rnn_wave_kernel(%arg0: memref<64x4xf32, #tpu.memory_space<vmem>>, %arg1: memref<4x128xf32, #tpu.memory_space<vmem>>, %arg2: memref<128x128xbf16, #tpu.memory_space<vmem>>, %arg3: memref<80x128xf32, #tpu.memory_space<vmem>>, %arg4: memref<128x64xf32, #tpu.memory_space<vmem>>, %arg5: memref<1x64xf32, #tpu.memory_space<vmem>>, %arg6: memref<8x64xf32, #tpu.memory_space<vmem>>) attributes {dimension_semantics = [], scalar_prefetch = 0 : i64, scratch_operands = 0 : i64, tpu.core_type = #tpu.core_type<tc>} {
    %c0 = arith.constant 0 : index
    %c0_0 = arith.constant 0 : index
    %0 = vector.load %arg0[%c0, %c0_0] : memref<64x4xf32, #tpu.memory_space<vmem>>, vector<64x4xf32>
    %c0_1 = arith.constant 0 : index
    %c0_2 = arith.constant 0 : index
    %1 = vector.load %arg1[%c0_1, %c0_2] : memref<4x128xf32, #tpu.memory_space<vmem>>, vector<4x128xf32>
    %cst = arith.constant dense<0.000000e+00> : vector<64x128xf32>
    %2 = tpu.matmul %0, %1, %cst {dimension_numbers = #tpu.dot_dimension_numbers<[1], [0], [0], [1], [0, 0, 1, 1], [], []>} : vector<64x4xf32>, vector<4x128xf32>, vector<64x128xf32> -> vector<64x128xf32>
    %c0_3 = arith.constant 0 : index
    %c0_4 = arith.constant 0 : index
    %3 = vector.load %arg2[%c0_3, %c0_4] : memref<128x128xbf16, #tpu.memory_space<vmem>>, vector<128x128xbf16>
    %cst_5 = arith.constant 0.000000e+00 : f32
    %4 = vector.broadcast %cst_5 : f32 to vector<8x128xf32>
    %5 = arith.truncf %4 : vector<8x128xf32> to vector<8x128xbf16>
    %cst_6 = arith.constant dense<0.000000e+00> : vector<8x128xf32>
    %6 = tpu.matmul %5, %3, %cst_6 {dimension_numbers = #tpu.dot_dimension_numbers<[1], [0], [0], [1], [0, 0, 1, 1], [], []>} : vector<8x128xbf16>, vector<128x128xbf16>, vector<8x128xf32> -> vector<8x128xf32>
    %c0_7 = arith.constant 0 : index
    %c0_8 = arith.constant 0 : index
    %7 = vector.load %arg3[%c0_7, %c0_8] : memref<80x128xf32, #tpu.memory_space<vmem>>, vector<8x128xf32>
    %8 = arith.addf %6, %7 : vector<8x128xf32>
    %9 = vector.extract_strided_slice %2 {offsets = [0, 0], sizes = [8, 128], strides = [1, 1]} : vector<64x128xf32> to vector<8x128xf32>
    %10 = arith.addf %8, %9 : vector<8x128xf32>
    %cst_9 = arith.constant 0.000000e+00 : f32
    %11 = vector.broadcast %cst_9 : f32 to vector<8x128xf32>
    %12 = arith.maximumf %10, %11 : vector<8x128xf32>
    %13 = arith.truncf %12 : vector<8x128xf32> to vector<8x128xbf16>
    %cst_10 = arith.constant dense<0.000000e+00> : vector<8x128xf32>
    %14 = tpu.matmul %13, %3, %cst_10 {dimension_numbers = #tpu.dot_dimension_numbers<[1], [0], [0], [1], [0, 0, 1, 1], [], []>} : vector<8x128xbf16>, vector<128x128xbf16>, vector<8x128xf32> -> vector<8x128xf32>
    %c8 = arith.constant 8 : index
    %c0_11 = arith.constant 0 : index
    %15 = vector.load %arg3[%c8, %c0_11] : memref<80x128xf32, #tpu.memory_space<vmem>>, vector<8x128xf32>
    %16 = arith.addf %14, %15 : vector<8x128xf32>
    %17 = vector.extract_strided_slice %2 {offsets = [8, 0], sizes = [8, 128], strides = [1, 1]} : vector<64x128xf32> to vector<8x128xf32>
    %18 = arith.addf %16, %17 : vector<8x128xf32>
    %cst_12 = arith.constant 0.000000e+00 : f32
    %19 = vector.broadcast %cst_12 : f32 to vector<8x128xf32>
    %20 = arith.maximumf %18, %19 : vector<8x128xf32>
    %21 = arith.truncf %20 : vector<8x128xf32> to vector<8x128xbf16>
    %cst_13 = arith.constant dense<0.000000e+00> : vector<8x128xf32>
    %22 = tpu.matmul %21, %3, %cst_13 {dimension_numbers = #tpu.dot_dimension_numbers<[1], [0], [0], [1], [0, 0, 1, 1], [], []>} : vector<8x128xbf16>, vector<128x128xbf16>, vector<8x128xf32> -> vector<8x128xf32>
    %c16 = arith.constant 16 : index
    %c0_14 = arith.constant 0 : index
    %23 = vector.load %arg3[%c16, %c0_14] : memref<80x128xf32, #tpu.memory_space<vmem>>, vector<8x128xf32>
    %24 = arith.addf %22, %23 : vector<8x128xf32>
    %25 = vector.extract_strided_slice %2 {offsets = [16, 0], sizes = [8, 128], strides = [1, 1]} : vector<64x128xf32> to vector<8x128xf32>
    %26 = arith.addf %24, %25 : vector<8x128xf32>
    %cst_15 = arith.constant 0.000000e+00 : f32
    %27 = vector.broadcast %cst_15 : f32 to vector<8x128xf32>
    %28 = arith.maximumf %26, %27 : vector<8x128xf32>
    %29 = arith.truncf %28 : vector<8x128xf32> to vector<8x128xbf16>
    %cst_16 = arith.constant dense<0.000000e+00> : vector<8x128xf32>
    %30 = tpu.matmul %29, %3, %cst_16 {dimension_numbers = #tpu.dot_dimension_numbers<[1], [0], [0], [1], [0, 0, 1, 1], [], []>} : vector<8x128xbf16>, vector<128x128xbf16>, vector<8x128xf32> -> vector<8x128xf32>
    %c24 = arith.constant 24 : index
    %c0_17 = arith.constant 0 : index
    %31 = vector.load %arg3[%c24, %c0_17] : memref<80x128xf32, #tpu.memory_space<vmem>>, vector<8x128xf32>
    %32 = arith.addf %30, %31 : vector<8x128xf32>
    %33 = vector.extract_strided_slice %2 {offsets = [24, 0], sizes = [8, 128], strides = [1, 1]} : vector<64x128xf32> to vector<8x128xf32>
    %34 = arith.addf %32, %33 : vector<8x128xf32>
    %cst_18 = arith.constant 0.000000e+00 : f32
    %35 = vector.broadcast %cst_18 : f32 to vector<8x128xf32>
    %36 = arith.maximumf %34, %35 : vector<8x128xf32>
    %37 = arith.truncf %36 : vector<8x128xf32> to vector<8x128xbf16>
    %cst_19 = arith.constant dense<0.000000e+00> : vector<8x128xf32>
    %38 = tpu.matmul %37, %3, %cst_19 {dimension_numbers = #tpu.dot_dimension_numbers<[1], [0], [0], [1], [0, 0, 1, 1], [], []>} : vector<8x128xbf16>, vector<128x128xbf16>, vector<8x128xf32> -> vector<8x128xf32>
    %c32 = arith.constant 32 : index
    %c0_20 = arith.constant 0 : index
    %39 = vector.load %arg3[%c32, %c0_20] : memref<80x128xf32, #tpu.memory_space<vmem>>, vector<8x128xf32>
    %40 = arith.addf %38, %39 : vector<8x128xf32>
    %41 = vector.extract_strided_slice %2 {offsets = [32, 0], sizes = [8, 128], strides = [1, 1]} : vector<64x128xf32> to vector<8x128xf32>
    %42 = arith.addf %40, %41 : vector<8x128xf32>
    %cst_21 = arith.constant 0.000000e+00 : f32
    %43 = vector.broadcast %cst_21 : f32 to vector<8x128xf32>
    %44 = arith.maximumf %42, %43 : vector<8x128xf32>
    %45 = arith.truncf %44 : vector<8x128xf32> to vector<8x128xbf16>
    %cst_22 = arith.constant dense<0.000000e+00> : vector<8x128xf32>
    %46 = tpu.matmul %45, %3, %cst_22 {dimension_numbers = #tpu.dot_dimension_numbers<[1], [0], [0], [1], [0, 0, 1, 1], [], []>} : vector<8x128xbf16>, vector<128x128xbf16>, vector<8x128xf32> -> vector<8x128xf32>
    %c40 = arith.constant 40 : index
    %c0_23 = arith.constant 0 : index
    %47 = vector.load %arg3[%c40, %c0_23] : memref<80x128xf32, #tpu.memory_space<vmem>>, vector<8x128xf32>
    %48 = arith.addf %46, %47 : vector<8x128xf32>
    %49 = vector.extract_strided_slice %2 {offsets = [40, 0], sizes = [8, 128], strides = [1, 1]} : vector<64x128xf32> to vector<8x128xf32>
    %50 = arith.addf %48, %49 : vector<8x128xf32>
    %cst_24 = arith.constant 0.000000e+00 : f32
    %51 = vector.broadcast %cst_24 : f32 to vector<8x128xf32>
    %52 = arith.maximumf %50, %51 : vector<8x128xf32>
    %53 = arith.truncf %52 : vector<8x128xf32> to vector<8x128xbf16>
    %cst_25 = arith.constant dense<0.000000e+00> : vector<8x128xf32>
    %54 = tpu.matmul %53, %3, %cst_25 {dimension_numbers = #tpu.dot_dimension_numbers<[1], [0], [0], [1], [0, 0, 1, 1], [], []>} : vector<8x128xbf16>, vector<128x128xbf16>, vector<8x128xf32> -> vector<8x128xf32>
    %c48 = arith.constant 48 : index
    %c0_26 = arith.constant 0 : index
    %55 = vector.load %arg3[%c48, %c0_26] : memref<80x128xf32, #tpu.memory_space<vmem>>, vector<8x128xf32>
    %56 = arith.addf %54, %55 : vector<8x128xf32>
    %57 = vector.extract_strided_slice %2 {offsets = [48, 0], sizes = [8, 128], strides = [1, 1]} : vector<64x128xf32> to vector<8x128xf32>
    %58 = arith.addf %56, %57 : vector<8x128xf32>
    %cst_27 = arith.constant 0.000000e+00 : f32
    %59 = vector.broadcast %cst_27 : f32 to vector<8x128xf32>
    %60 = arith.maximumf %58, %59 : vector<8x128xf32>
    %61 = arith.truncf %60 : vector<8x128xf32> to vector<8x128xbf16>
    %cst_28 = arith.constant dense<0.000000e+00> : vector<8x128xf32>
    %62 = tpu.matmul %61, %3, %cst_28 {dimension_numbers = #tpu.dot_dimension_numbers<[1], [0], [0], [1], [0, 0, 1, 1], [], []>} : vector<8x128xbf16>, vector<128x128xbf16>, vector<8x128xf32> -> vector<8x128xf32>
    %c56 = arith.constant 56 : index
    %c0_29 = arith.constant 0 : index
    %63 = vector.load %arg3[%c56, %c0_29] : memref<80x128xf32, #tpu.memory_space<vmem>>, vector<8x128xf32>
    %64 = arith.addf %62, %63 : vector<8x128xf32>
    %65 = vector.extract_strided_slice %2 {offsets = [56, 0], sizes = [8, 128], strides = [1, 1]} : vector<64x128xf32> to vector<8x128xf32>
    %66 = arith.addf %64, %65 : vector<8x128xf32>
    %cst_30 = arith.constant 0.000000e+00 : f32
    %67 = vector.broadcast %cst_30 : f32 to vector<8x128xf32>
    %68 = arith.maximumf %66, %67 : vector<8x128xf32>
    %69 = arith.truncf %68 : vector<8x128xf32> to vector<8x128xbf16>
    %cst_31 = arith.constant dense<0.000000e+00> : vector<8x128xf32>
    %70 = tpu.matmul %69, %3, %cst_31 {dimension_numbers = #tpu.dot_dimension_numbers<[1], [0], [0], [1], [0, 0, 1, 1], [], []>} : vector<8x128xbf16>, vector<128x128xbf16>, vector<8x128xf32> -> vector<8x128xf32>
    %c64 = arith.constant 64 : index
    %c0_32 = arith.constant 0 : index
    %71 = vector.load %arg3[%c64, %c0_32] : memref<80x128xf32, #tpu.memory_space<vmem>>, vector<8x128xf32>
    %72 = arith.addf %70, %71 : vector<8x128xf32>
    %cst_33 = arith.constant 0.000000e+00 : f32
    %73 = vector.broadcast %cst_33 : f32 to vector<8x128xf32>
    %74 = arith.maximumf %72, %73 : vector<8x128xf32>
    %75 = arith.truncf %74 : vector<8x128xf32> to vector<8x128xbf16>
    %cst_34 = arith.constant dense<0.000000e+00> : vector<8x128xf32>
    %76 = tpu.matmul %75, %3, %cst_34 {dimension_numbers = #tpu.dot_dimension_numbers<[1], [0], [0], [1], [0, 0, 1, 1], [], []>} : vector<8x128xbf16>, vector<128x128xbf16>, vector<8x128xf32> -> vector<8x128xf32>
    %c72 = arith.constant 72 : index
    %c0_35 = arith.constant 0 : index
    %77 = vector.load %arg3[%c72, %c0_35] : memref<80x128xf32, #tpu.memory_space<vmem>>, vector<8x128xf32>
    %78 = arith.addf %76, %77 : vector<8x128xf32>
    %cst_36 = arith.constant 0.000000e+00 : f32
    %79 = vector.broadcast %cst_36 : f32 to vector<8x128xf32>
    %80 = arith.maximumf %78, %79 : vector<8x128xf32>
    %c0_37 = arith.constant 0 : index
    %c0_38 = arith.constant 0 : index
    %81 = vector.load %arg4[%c0_37, %c0_38] : memref<128x64xf32, #tpu.memory_space<vmem>>, vector<128x64xf32>
    %cst_39 = arith.constant dense<0.000000e+00> : vector<8x64xf32>
    %82 = tpu.matmul %80, %81, %cst_39 {dimension_numbers = #tpu.dot_dimension_numbers<[1], [0], [0], [1], [0, 0, 1, 1], [], []>} : vector<8x128xf32>, vector<128x64xf32>, vector<8x64xf32> -> vector<8x64xf32>
    %c0_40 = arith.constant 0 : index
    %c0_41 = arith.constant 0 : index
    %83 = vector.load %arg5[%c0_40, %c0_41] : memref<1x64xf32, #tpu.memory_space<vmem>>, vector<1x64xf32>
    %84 = vector.broadcast %83 : vector<1x64xf32> to vector<8x64xf32>
    %85 = arith.addf %82, %84 : vector<8x64xf32>
    %c0_42 = arith.constant 0 : index
    %c0_43 = arith.constant 0 : index
    %86 = vector.load %arg6[%c0_42, %c0_43] : memref<8x64xf32, #tpu.memory_space<vmem>>, vector<8x64xf32>
    tpu.vector_store %arg6[%c0_42, %c0_43], %85 {strides = array<i32>} : memref<8x64xf32, #tpu.memory_space<vmem>>, vector<8x64xf32>,
    return
  }
}

</mosaic_0001>

<llo_original>
// kernel: tpu_custom_call.1
$region0: #{tpu_custom_call.1}
  #allocation0 [shape = 'u32[]', space=smem, size = 0x4, offset = 0x4, fixed_abs, tag = 'smem constant byte address 0x4 - core index']
  #allocation1 [shape = 'u32[144,128]{1,0:T(1,128)}', space=vmem, size = 0x12000, scoped, tag = 'internal scratch']
  %s0 = inlined_call_operand.vmem [shape: f32[64,4], index: 0, kind: input, shape index: {}]
  %s1 = inlined_call_operand.vmem [shape: f32[4,128], index: 1, kind: input, shape index: {}]
  %s2 = inlined_call_operand.vmem [shape: bf16[128,128], index: 2, kind: input, shape index: {}]
  %s3 = inlined_call_operand.vmem [shape: f32[80,128], index: 3, kind: input, shape index: {}]
  %s4 = inlined_call_operand.vmem [shape: f32[128,64], index: 4, kind: input, shape index: {}]
  %s5 = inlined_call_operand.vmem [shape: f32[1,64], index: 5, kind: input, shape index: {}]
  %s6 = inlined_call_operand.hbm [shape: f32[8,64], index: 6, kind: output, shape index: {}]
  %s7 = sld [smem:[#allocation0]]
  $region34: #{tpu_custom_call.1} parent=0
    _
  %s9 = ssub.s32 1, %s7
  %s10 = scalar_select 0, %s9, %s7
  $region1: #{tpu_custom_call.1} parent=0
    #allocation2 [shape = 'u8[4096]{0}', space=vmem, size = 0x1000, scoped, tag = 'output window, operand 0, single buffered']
    #allocation3 [shape = 's32[1]{0}', space=sflag, size = 0x4, scoped, tag = 'scoped memory for tpu_custom_call.1']
    %11 = vsyncpa [#allocation3], 0
    // Predicated region
    $region2: #{tpu_custom_call.1} parent=1 // pred_check
      _
    $region3: #{tpu_custom_call.1} parent=1 // pred_check_branch
      %13 = sbr.rel (0) target = $region5
    $region4: #{tpu_custom_call.1} parent=1 // pred_region
      _
    $region5: #{tpu_custom_call.1} parent=1 // pred_fallthru
      _
    // Predicated region
    $region6: #{tpu_custom_call.1} parent=1 // pred_check
      _
    $region7: #{tpu_custom_call.1} parent=1 // pred_check_branch
      %15 = sbr.rel (0) target = $region9
    $region8: #{tpu_custom_call.1} parent=1 // pred_region
      _
    $region9: #{tpu_custom_call.1} parent=1 // pred_fallthru
      _
    // Predicated region
    $region10: #{tpu_custom_call.1} parent=1 // pred_check
      _
    $region11: #{tpu_custom_call.1} parent=1 // pred_check_branch
      %17 = sbr.rel (0) target = $region13
    $region12: #{tpu_custom_call.1} parent=1 // pred_region
      _
    $region13: #{tpu_custom_call.1} parent=1 // pred_fallthru
      _
    // Predicated region
    $region14: #{tpu_custom_call.1} parent=1 // pred_check
      _
    $region15: #{tpu_custom_call.1} parent=1 // pred_check_branch
      %19 = sbr.rel (0) target = $region17
    $region16: #{tpu_custom_call.1} parent=1 // pred_region
      _
    $region17: #{tpu_custom_call.1} parent=1 // pred_fallthru
      _
    // Predicated region
    $region18: #{tpu_custom_call.1} parent=1 // pred_check
      _
    $region19: #{tpu_custom_call.1} parent=1 // pred_check_branch
      %21 = sbr.rel (0) target = $region21
    $region20: #{tpu_custom_call.1} parent=1 // pred_region
      _
    $region21: #{tpu_custom_call.1} parent=1 // pred_fallthru
      _
    // Predicated region
    $region22: #{tpu_custom_call.1} parent=1 // pred_check
      _
    $region23: #{tpu_custom_call.1} parent=1 // pred_check_branch
      %23 = sbr.rel (0) target = $region25
    $region24: #{tpu_custom_call.1} parent=1 // pred_region
      _
    $region25: #{tpu_custom_call.1} parent=1 // pred_fallthru
      _
    %v25 = vld [vmem:[%s0] sm:$0xff]
    %v26 = vld [vmem:[%s0 + $0x8] sm:$0xff]
    %v27 = vld [vmem:[%s0 + $0x10] sm:$0xff]
    %v28 = vld [vmem:[%s0 + $0x18] sm:$0xff]
    %v29 = vld [vmem:[%s0 + $0x20] sm:$0xff]
    %v30 = vld [vmem:[%s0 + $0x28] sm:$0xff]
    %v31 = vld [vmem:[%s0 + $0x30] sm:$0xff]
    %v32 = vld [vmem:[%s0 + $0x38] sm:$0xff]
    %v33 = vld [vmem:[%s1] sm:$0xf]
    %vm34 = vcmask 31744
    %v36 = vsel %vm34, %v25, 0
    %v39 = vsel %vm34, %v26, 0
    %v42 = vsel %vm34, %v27, 0
    %v45 = vsel %vm34, %v28, 0
    %v48 = vsel %vm34, %v29, 0
    %v51 = vsel %vm34, %v30, 0
    %v54 = vsel %vm34, %v31, 0
    %v57 = vsel %vm34, %v32, 0
    %vm59 = vcmask 1043456
    %v61 = vsel %vm59, %v33, 0
    %63 = vmatprep.subr.mxu0 0.0
    %64 = vmatpush1.msra.mxu0 %v61
    %65 = vmatprep.subr.mxu0 0.0
    %66 = vmatpush1.msra.mxu0 0.0
    %67 = vmatprep.subr.mxu0 0.0
    %68 = vmatpush1.msra.mxu0 0.0
    %69 = vmatprep.subr.mxu0 0.0
    %70 = vmatpush1.msra.mxu0 0.0
    %71 = vmatprep.subr.mxu0 0.0
    %72 = vmatpush1.msra.mxu0 0.0
    %73 = vmatprep.subr.mxu0 0.0
    %74 = vmatpush1.msra.mxu0 0.0
    %75 = vmatprep.subr.mxu0 0.0
    %76 = vmatpush1.msra.mxu0 0.0
    %77 = vmatprep.subr.mxu0 0.0
    %78 = vmatpush1.msra.mxu0 0.0
    %79 = vmatprep.subr.mxu0 0.0
    %80 = vmatpush1.msra.mxu0 0.0
    %81 = vmatprep.subr.mxu0 0.0
    %82 = vmatpush1.msra.mxu0 0.0
    %83 = vmatprep.subr.mxu0 0.0
    %84 = vmatpush1.msra.mxu0 0.0
    %85 = vmatprep.subr.mxu0 0.0
    %86 = vmatpush1.msra.mxu0 0.0
    %87 = vmatprep.subr.mxu0 0.0
    %88 = vmatpush1.msra.mxu0 0.0
    %89 = vmatprep.subr.mxu0 0.0
    %90 = vmatpush1.msra.mxu0 0.0
    %91 = vmatprep.subr.mxu0 0.0
    %92 = vmatpush1.msra.mxu0 0.0
    %93 = vmatprep.subr.mxu0 0.0
    %94 = vmatpush1.msra.mxu0 0.0
    %95 = vmatprep.subr.mxu0 0.0
    %96 = vmatpush1.msra.mxu0 0.0
    %97 = vmatprep.subr.mxu0 0.0
    %98 = vmatpush1.msra.mxu0 0.0
    %99 = vmatprep.subr.mxu0 0.0
    %100 = vmatpush1.msra.mxu0 0.0
    %101 = vmatprep.subr.mxu0 0.0
    %102 = vmatpush1.msra.mxu0 0.0
    %103 = vmatprep.subr.mxu0 0.0
    %104 = vmatpush1.msra.mxu0 0.0
    %105 = vmatprep.subr.mxu0 0.0
    %106 = vmatpush1.msra.mxu0 0.0
    %107 = vmatprep.subr.mxu0 0.0
    %108 = vmatpush1.msra.mxu0 0.0
    %109 = vmatprep.subr.mxu0 0.0
    %110 = vmatpush1.msra.mxu0 0.0
    %111 = vmatprep.subr.mxu0 0.0
    %112 = vmatpush1.msra.mxu0 0.0
    %113 = vmatprep.subr.mxu0 0.0
    %114 = vmatpush1.msra.mxu0 0.0
    %115 = vmatprep.subr.mxu0 0.0
    %116 = vmatpush1.msra.mxu0 0.0
    %117 = vmatprep.subr.mxu0 0.0
    %118 = vmatpush1.msra.mxu0 0.0
    %119 = vmatprep.subr.mxu0 0.0
    %120 = vmatpush1.msra.mxu0 0.0
    %121 = vmatprep.subr.mxu0 0.0
    %122 = vmatpush1.msra.mxu0 0.0
    %123 = vmatprep.subr.mxu0 0.0
    %124 = vmatpush1.msra.mxu0 0.0
    %125 = vmatprep.subr.mxu0 0.0
    %126 = vmatpush1.msra.mxu0 0.0
    %127 = vmatprep.mubr.f32.mxu0 0.0
    %128 = vmatmul.mubr.f32.gmra.mrb[0].mxu0 %v36
    %v129 = vpop.f32.mrb[0].mxu0
    %v130 = vadd.f32 0.0, %v129
    %v131 = vpop.f32.mrb[0].mxu0
    %132 = vmatprep.mubr.f32.mxu0 0.0
    %133 = vmatmul.mubr.f32.gmra.mrb[0].mxu0 %v39
    %v134 = vpop.f32.mrb[0].mxu0
    %v135 = vadd.f32 0.0, %v134
    %v136 = vpop.f32.mrb[0].mxu0
    %137 = vmatprep.mubr.f32.mxu0 0.0
    %138 = vmatmul.mubr.f32.gmra.mrb[0].mxu0 %v42
    %v139 = vpop.f32.mrb[0].mxu0
    %v140 = vadd.f32 0.0, %v139
    %v141 = vpop.f32.mrb[0].mxu0
    %142 = vmatprep.mubr.f32.mxu0 0.0
    %143 = vmatmul.mubr.f32.gmra.mrb[0].mxu0 %v45
    %v144 = vpop.f32.mrb[0].mxu0
    %v145 = vadd.f32 0.0, %v144
    %v146 = vpop.f32.mrb[0].mxu0
    %147 = vmatprep.mubr.f32.mxu0 0.0
    %148 = vmatmul.mubr.f32.gmra.mrb[0].mxu0 %v48
    %v149 = vpop.f32.mrb[0].mxu0
    %v150 = vadd.f32 0.0, %v149
    %v151 = vpop.f32.mrb[0].mxu0
    %152 = vmatprep.mubr.f32.mxu0 0.0
    %153 = vmatmul.mubr.f32.gmra.mrb[0].mxu0 %v51
    %v154 = vpop.f32.mrb[0].mxu0
    %v155 = vadd.f32 0.0, %v154
    %v156 = vpop.f32.mrb[0].mxu0
    %157 = vmatprep.mubr.f32.mxu0 0.0
    %158 = vmatmul.mubr.f32.gmra.mrb[0].mxu0 %v54
    %v159 = vpop.f32.mrb[0].mxu0
    %v160 = vadd.f32 0.0, %v159
    %v161 = vpop.f32.mrb[0].mxu0
    %162 = vmatprep.mubr.f32.mxu0 0.0
    %163 = vmatmul.mubr.f32.gmra.mrb[0].mxu0 %v57
    %v164 = vpop.f32.mrb[0].mxu0
    %v165 = vadd.f32 0.0, %v164
    %v166 = vpop.f32.mrb[0].mxu0
    %167 = vdwg.mxu0
    %v168 = vld [vmem:[%s2] sm:$0xf]
    %v169 = vld [vmem:[%s2 + $0x4] sm:$0xf]
    %v170 = vld [vmem:[%s2 + $0x8] sm:$0xf]
    %v171 = vld [vmem:[%s2 + $0xc] sm:$0xf]
    %v172 = vld [vmem:[%s2 + $0x10] sm:$0xf]
    %v173 = vld [vmem:[%s2 + $0x14] sm:$0xf]
    %v174 = vld [vmem:[%s2 + $0x18] sm:$0xf]
    %v175 = vld [vmem:[%s2 + $0x1c] sm:$0xf]
    %v176 = vld [vmem:[%s2 + $0x20] sm:$0xf]
    %v177 = vld [vmem:[%s2 + $0x24] sm:$0xf]
    %v178 = vld [vmem:[%s2 + $0x28] sm:$0xf]
    %v179 = vld [vmem:[%s2 + $0x2c] sm:$0xf]
    %v180 = vld [vmem:[%s2 + $0x30] sm:$0xf]
    %v181 = vld [vmem:[%s2 + $0x34] sm:$0xf]
    %v182 = vld [vmem:[%s2 + $0x38] sm:$0xf]
    %v183 = vld [vmem:[%s2 + $0x3c] sm:$0xf]
    %v184 = vld [vmem:[%s3] sm:$0xff]
    %v201 = vunpack.c.l.b16 %v168
    %v202 = vunpack.c.l.b16 %v169
    %v203 = vunpack.c.l.b16 %v170
    %v204 = vunpack.c.l.b16 %v171
    %v205 = vunpack.c.l.b16 %v172
    %v206 = vunpack.c.l.b16 %v173
    %v207 = vunpack.c.l.b16 %v174
    %v208 = vunpack.c.l.b16 %v175
    %v209 = vunpack.c.l.b16 %v176
    %v210 = vunpack.c.l.b16 %v177
    %v211 = vunpack.c.l.b16 %v178
    %v212 = vunpack.c.l.b16 %v179
    %v213 = vunpack.c.l.b16 %v180
    %v214 = vunpack.c.l.b16 %v181
    %v215 = vunpack.c.l.b16 %v182
    %v216 = vunpack.c.l.b16 %v183
    %v217 = vpack.c.b16 %v202, %v201
    %v218 = vpack.c.b16 %v204, %v203
    %v219 = vpack.c.b16 %v206, %v205
    %v220 = vpack.c.b16 %v208, %v207
    %v221 = vpack.c.b16 %v210, %v209
    %v222 = vpack.c.b16 %v212, %v211
    %v223 = vpack.c.b16 %v214, %v213
    %v224 = vpack.c.b16 %v216, %v215
    %233 = vmatprep.subr.bf16.mxu0 0
    %234 = vmatpush1.bf16.msra.mxu0 %v217
    %235 = vmatprep.subr.bf16.mxu0 0
    %236 = vmatpush1.bf16.msra.mxu0 %v218
    %237 = vmatprep.subr.bf16.mxu0 0
    %238 = vmatpush1.bf16.msra.mxu0 %v219
    %239 = vmatprep.subr.bf16.mxu0 0
    %240 = vmatpush1.bf16.msra.mxu0 %v220
    %241 = vmatprep.subr.bf16.mxu0 0
    %242 = vmatpush1.bf16.msra.mxu0 %v221
    %243 = vmatprep.subr.bf16.mxu0 0
    %244 = vmatpush1.bf16.msra.mxu0 %v222
    %245 = vmatprep.subr.bf16.mxu0 0
    %246 = vmatpush1.bf16.msra.mxu0 %v223
    %247 = vmatprep.subr.bf16.mxu0 0
    %248 = vmatpush1.bf16.msra.mxu0 %v224
    %249 = vmatprep.subr.bf16.mxu0 0
    %250 = vmatpush1.bf16.msra.mxu0 0
    %251 = vmatprep.subr.bf16.mxu0 0
    %252 = vmatpush1.bf16.msra.mxu0 0
    %253 = vmatprep.subr.bf16.mxu0 0
    %254 = vmatpush1.bf16.msra.mxu0 0
    %255 = vmatprep.subr.bf16.mxu0 0
    %256 = vmatpush1.bf16.msra.mxu0 0
    %257 = vmatprep.subr.bf16.mxu0 0
    %258 = vmatpush1.bf16.msra.mxu0 0
    %259 = vmatprep.subr.bf16.mxu0 0
    %260 = vmatpush1.bf16.msra.mxu0 0
    %261 = vmatprep.subr.bf16.mxu0 0
    %262 = vmatpush1.bf16.msra.mxu0 0
    %263 = vmatprep.subr.bf16.mxu0 0
    %264 = vmatpush1.bf16.msra.mxu0 0
    %265 = vmatprep.mubr.bf16.mxu0 0
    %266 = vmatmul.mubr.bf16.gmra.mrb[0].mxu0 0
    %v267 = vpop.f32.mrb[0].mxu0
    %v268 = vadd.f32 %v184, %v267
    %v269 = vpop.f32.mrb[0].mxu0
    %v270 = vpop.f32.mrb[0].mxu0
    %v271 = vpop.f32.mrb[0].mxu0
    %272 = vdwg.mxu0
    %v273 = vadd.f32 %v268, %v130
    %v274 = vmax.f32 %v273, 0.0
    %v275 = vpack.c.bf16 %v274, %v274
    %v276 = vld [vmem:[%s3 + $0x8] sm:$0xff]
    %277 = vmatprep.subr.bf16.mxu0 0
    %278 = vmatpush1.bf16.msra.mxu0 %v217
    %279 = vmatprep.subr.bf16.mxu0 0
    %280 = vmatpush1.bf16.msra.mxu0 %v218
    %281 = vmatprep.subr.bf16.mxu0 0
    %282 = vmatpush1.bf16.msra.mxu0 %v219
    %283 = vmatprep.subr.bf16.mxu0 0
    %284 = vmatpush1.bf16.msra.mxu0 %v220
    %285 = vmatprep.subr.bf16.mxu0 0
    %286 = vmatpush1.bf16.msra.mxu0 %v221
    %287 = vmatprep.subr.bf16.mxu0 0
    %288 = vmatpush1.bf16.msra.mxu0 %v222
    %289 = vmatprep.subr.bf16.mxu0 0
    %290 = vmatpush1.bf16.msra.mxu0 %v223
    %291 = vmatprep.subr.bf16.mxu0 0
    %292 = vmatpush1.bf16.msra.mxu0 %v224
    %293 = vmatprep.subr.bf16.mxu0 0
    %294 = vmatpush1.bf16.msra.mxu0 0
    %295 = vmatprep.subr.bf16.mxu0 0
    %296 = vmatpush1.bf16.msra.mxu0 0
    %297 = vmatprep.subr.bf16.mxu0 0
    %298 = vmatpush1.bf16.msra.mxu0 0
    %299 = vmatprep.subr.bf16.mxu0 0
    %300 = vmatpush1.bf16.msra.mxu0 0
    %301 = vmatprep.subr.bf16.mxu0 0
    %302 = vmatpush1.bf16.msra.mxu0 0
    %303 = vmatprep.subr.bf16.mxu0 0
    %304 = vmatpush1.bf16.msra.mxu0 0
    %305 = vmatprep.subr.bf16.mxu0 0
    %306 = vmatpush1.bf16.msra.mxu0 0
    %307 = vmatprep.subr.bf16.mxu0 0
    %308 = vmatpush1.bf16.msra.mxu0 0
    %309 = vmatprep.mubr.bf16.mxu0 0
    %310 = vmatmul.mubr.bf16.gmra.mrb[0].mxu0 %v275
    %v311 = vpop.f32.mrb[0].mxu0
    %v312 = vadd.f32 %v276, %v311
    %v313 = vpop.f32.mrb[0].mxu0
    %v314 = vpop.f32.mrb[0].mxu0
    %v315 = vpop.f32.mrb[0].mxu0
    %316 = vdwg.mxu0
    %v317 = vadd.f32 %v312, %v135
    %v318 = vmax.f32 %v317, 0.0
    %v319 = vpack.c.bf16 %v318, %v318
    %v320 = vld [vmem:[%s3 + $0x10] sm:$0xff]
    %321 = vmatprep.subr.bf16.mxu0 0
    %322 = vmatpush1.bf16.msra.mxu0 %v217
    %323 = vmatprep.subr.bf16.mxu0 0
    %324 = vmatpush1.bf16.msra.mxu0 %v218
    %325 = vmatprep.subr.bf16.mxu0 0
    %326 = vmatpush1.bf16.msra.mxu0 %v219
    %327 = vmatprep.subr.bf16.mxu0 0
    %328 = vmatpush1.bf16.msra.mxu0 %v220
    %329 = vmatprep.subr.bf16.mxu0 0
    %330 = vmatpush1.bf16.msra.mxu0 %v221
    %331 = vmatprep.subr.bf16.mxu0 0
    %332 = vmatpush1.bf16.msra.mxu0 %v222
    %333 = vmatprep.subr.bf16.mxu0 0
    %334 = vmatpush1.bf16.msra.mxu0 %v223
    %335 = vmatprep.subr.bf16.mxu0 0
    %336 = vmatpush1.bf16.msra.mxu0 %v224
    %337 = vmatprep.subr.bf16.mxu0 0
    %338 = vmatpush1.bf16.msra.mxu0 0
    %339 = vmatprep.subr.bf16.mxu0 0
    %340 = vmatpush1.bf16.msra.mxu0 0
    %341 = vmatprep.subr.bf16.mxu0 0
    %342 = vmatpush1.bf16.msra.mxu0 0
    %343 = vmatprep.subr.bf16.mxu0 0
    %344 = vmatpush1.bf16.msra.mxu0 0
    %345 = vmatprep.subr.bf16.mxu0 0
    %346 = vmatpush1.bf16.msra.mxu0 0
    %347 = vmatprep.subr.bf16.mxu0 0
    %348 = vmatpush1.bf16.msra.mxu0 0
    %349 = vmatprep.subr.bf16.mxu0 0
    %350 = vmatpush1.bf16.msra.mxu0 0
    %351 = vmatprep.subr.bf16.mxu0 0
    %352 = vmatpush1.bf16.msra.mxu0 0
    %353 = vmatprep.mubr.bf16.mxu0 0
    %354 = vmatmul.mubr.bf16.gmra.mrb[0].mxu0 %v319
    %v355 = vpop.f32.mrb[0].mxu0
    %v356 = vadd.f32 %v320, %v355
    %v357 = vpop.f32.mrb[0].mxu0
    %v358 = vpop.f32.mrb[0].mxu0
    %v359 = vpop.f32.mrb[0].mxu0
    %360 = vdwg.mxu0
    %v361 = vadd.f32 %v356, %v140
    %v362 = vmax.f32 %v361, 0.0
    %v363 = vpack.c.bf16 %v362, %v362
    %v364 = vld [vmem:[%s3 + $0x18] sm:$0xff]
    %365 = vmatprep.subr.bf16.mxu0 0
    %366 = vmatpush1.bf16.msra.mxu0 %v217
    %367 = vmatprep.subr.bf16.mxu0 0
    %368 = vmatpush1.bf16.msra.mxu0 %v218
    %369 = vmatprep.subr.bf16.mxu0 0
    %370 = vmatpush1.bf16.msra.mxu0 %v219
    %371 = vmatprep.subr.bf16.mxu0 0
    %372 = vmatpush1.bf16.msra.mxu0 %v220
    %373 = vmatprep.subr.bf16.mxu0 0
    %374 = vmatpush1.bf16.msra.mxu0 %v221
    %375 = vmatprep.subr.bf16.mxu0 0
    %376 = vmatpush1.bf16.msra.mxu0 %v222
    %377 = vmatprep.subr.bf16.mxu0 0
    %378 = vmatpush1.bf16.msra.mxu0 %v223
    %379 = vmatprep.subr.bf16.mxu0 0
    %380 = vmatpush1.bf16.msra.mxu0 %v224
    %381 = vmatprep.subr.bf16.mxu0 0
    %382 = vmatpush1.bf16.msra.mxu0 0
    %383 = vmatprep.subr.bf16.mxu0 0
    %384 = vmatpush1.bf16.msra.mxu0 0
    %385 = vmatprep.subr.bf16.mxu0 0
    %386 = vmatpush1.bf16.msra.mxu0 0
    %387 = vmatprep.subr.bf16.mxu0 0
    %388 = vmatpush1.bf16.msra.mxu0 0
    %389 = vmatprep.subr.bf16.mxu0 0
    %390 = vmatpush1.bf16.msra.mxu0 0
    %391 = vmatprep.subr.bf16.mxu0 0
    %392 = vmatpush1.bf16.msra.mxu0 0
    %393 = vmatprep.subr.bf16.mxu0 0
    %394 = vmatpush1.bf16.msra.mxu0 0
    %395 = vmatprep.subr.bf16.mxu0 0
    %396 = vmatpush1.bf16.msra.mxu0 0
    %397 = vmatprep.mubr.bf16.mxu0 0
    %398 = vmatmul.mubr.bf16.gmra.mrb[0].mxu0 %v363
    %v399 = vpop.f32.mrb[0].mxu0
    %v400 = vadd.f32 %v364, %v399
    %v401 = vpop.f32.mrb[0].mxu0
    %v402 = vpop.f32.mrb[0].mxu0
    %v403 = vpop.f32.mrb[0].mxu0
    %404 = vdwg.mxu0
    %v405 = vadd.f32 %v400, %v145
    %v406 = vmax.f32 %v405, 0.0
    %v407 = vpack.c.bf16 %v406, %v406
    %v408 = vld [vmem:[%s3 + $0x20] sm:$0xff]
    %409 = vmatprep.subr.bf16.mxu0 0
    %410 = vmatpush1.bf16.msra.mxu0 %v217
    %411 = vmatprep.subr.bf16.mxu0 0
    %412 = vmatpush1.bf16.msra.mxu0 %v218
    %413 = vmatprep.subr.bf16.mxu0 0
    %414 = vmatpush1.bf16.msra.mxu0 %v219
    %415 = vmatprep.subr.bf16.mxu0 0
    %416 = vmatpush1.bf16.msra.mxu0 %v220
    %417 = vmatprep.subr.bf16.mxu0 0
    %418 = vmatpush1.bf16.msra.mxu0 %v221
    %419 = vmatprep.subr.bf16.mxu0 0
    %420 = vmatpush1.bf16.msra.mxu0 %v222
    %421 = vmatprep.subr.bf16.mxu0 0
    %422 = vmatpush1.bf16.msra.mxu0 %v223
    %423 = vmatprep.subr.bf16.mxu0 0
    %424 = vmatpush1.bf16.msra.mxu0 %v224
    %425 = vmatprep.subr.bf16.mxu0 0
    %426 = vmatpush1.bf16.msra.mxu0 0
    %427 = vmatprep.subr.bf16.mxu0 0
    %428 = vmatpush1.bf16.msra.mxu0 0
    %429 = vmatprep.subr.bf16.mxu0 0
    %430 = vmatpush1.bf16.msra.mxu0 0
    %431 = vmatprep.subr.bf16.mxu0 0
    %432 = vmatpush1.bf16.msra.mxu0 0
    %433 = vmatprep.subr.bf16.mxu0 0
    %434 = vmatpush1.bf16.msra.mxu0 0
    %435 = vmatprep.subr.bf16.mxu0 0
    %436 = vmatpush1.bf16.msra.mxu0 0
    %437 = vmatprep.subr.bf16.mxu0 0
    %438 = vmatpush1.bf16.msra.mxu0 0
    %439 = vmatprep.subr.bf16.mxu0 0
    %440 = vmatpush1.bf16.msra.mxu0 0
    %441 = vmatprep.mubr.bf16.mxu0 0
    %442 = vmatmul.mubr.bf16.gmra.mrb[0].mxu0 %v407
    %v443 = vpop.f32.mrb[0].mxu0
    %v444 = vadd.f32 %v408, %v443
    %v445 = vpop.f32.mrb[0].mxu0
    %v446 = vpop.f32.mrb[0].mxu0
    %v447 = vpop.f32.mrb[0].mxu0
    %448 = vdwg.mxu0
    %v449 = vadd.f32 %v444, %v150
    %v450 = vmax.f32 %v449, 0.0
    %v451 = vpack.c.bf16 %v450, %v450
    %v452 = vld [vmem:[%s3 + $0x28] sm:$0xff]
    %453 = vmatprep.subr.bf16.mxu0 0
    %454 = vmatpush1.bf16.msra.mxu0 %v217
    %455 = vmatprep.subr.bf16.mxu0 0
    %456 = vmatpush1.bf16.msra.mxu0 %v218
    %457 = vmatprep.subr.bf16.mxu0 0
    %458 = vmatpush1.bf16.msra.mxu0 %v219
    %459 = vmatprep.subr.bf16.mxu0 0
    %460 = vmatpush1.bf16.msra.mxu0 %v220
    %461 = vmatprep.subr.bf16.mxu0 0
    %462 = vmatpush1.bf16.msra.mxu0 %v221
    %463 = vmatprep.subr.bf16.mxu0 0
    %464 = vmatpush1.bf16.msra.mxu0 %v222
    %465 = vmatprep.subr.bf16.mxu0 0
    %466 = vmatpush1.bf16.msra.mxu0 %v223
    %467 = vmatprep.subr.bf16.mxu0 0
    %468 = vmatpush1.bf16.msra.mxu0 %v224
    %469 = vmatprep.subr.bf16.mxu0 0
    %470 = vmatpush1.bf16.msra.mxu0 0
    %471 = vmatprep.subr.bf16.mxu0 0
    %472 = vmatpush1.bf16.msra.mxu0 0
    %473 = vmatprep.subr.bf16.mxu0 0
    %474 = vmatpush1.bf16.msra.mxu0 0
    %475 = vmatprep.subr.bf16.mxu0 0
    %476 = vmatpush1.bf16.msra.mxu0 0
    %477 = vmatprep.subr.bf16.mxu0 0
    %478 = vmatpush1.bf16.msra.mxu0 0
    %479 = vmatprep.subr.bf16.mxu0 0
    %480 = vmatpush1.bf16.msra.mxu0 0
    %481 = vmatprep.subr.bf16.mxu0 0
    %482 = vmatpush1.bf16.msra.mxu0 0
    %483 = vmatprep.subr.bf16.mxu0 0
    %484 = vmatpush1.bf16.msra.mxu0 0
    %485 = vmatprep.mubr.bf16.mxu0 0
    %486 = vmatmul.mubr.bf16.gmra.mrb[0].mxu0 %v451
    %v487 = vpop.f32.mrb[0].mxu0
    %v488 = vadd.f32 %v452, %v487
    %v489 = vpop.f32.mrb[0].mxu0
    %v490 = vpop.f32.mrb[0].mxu0
    %v491 = vpop.f32.mrb[0].mxu0
    %492 = vdwg.mxu0
    %v493 = vadd.f32 %v488, %v155
    %v494 = vmax.f32 %v493, 0.0
    %v495 = vpack.c.bf16 %v494, %v494
    %v496 = vld [vmem:[%s3 + $0x30] sm:$0xff]
    %497 = vmatprep.subr.bf16.mxu0 0
    %498 = vmatpush1.bf16.msra.mxu0 %v217
    %499 = vmatprep.subr.bf16.mxu0 0
    %500 = vmatpush1.bf16.msra.mxu0 %v218
    %501 = vmatprep.subr.bf16.mxu0 0
    %502 = vmatpush1.bf16.msra.mxu0 %v219
    %503 = vmatprep.subr.bf16.mxu0 0
    %504 = vmatpush1.bf16.msra.mxu0 %v220
    %505 = vmatprep.subr.bf16.mxu0 0
    %506 = vmatpush1.bf16.msra.mxu0 %v221
    %507 = vmatprep.subr.bf16.mxu0 0
    %508 = vmatpush1.bf16.msra.mxu0 %v222
    %509 = vmatprep.subr.bf16.mxu0 0
    %510 = vmatpush1.bf16.msra.mxu0 %v223
    %511 = vmatprep.subr.bf16.mxu0 0
    %512 = vmatpush1.bf16.msra.mxu0 %v224
    %513 = vmatprep.subr.bf16.mxu0 0
    %514 = vmatpush1.bf16.msra.mxu0 0
    %515 = vmatprep.subr.bf16.mxu0 0
    %516 = vmatpush1.bf16.msra.mxu0 0
    %517 = vmatprep.subr.bf16.mxu0 0
    %518 = vmatpush1.bf16.msra.mxu0 0
    %519 = vmatprep.subr.bf16.mxu0 0
    %520 = vmatpush1.bf16.msra.mxu0 0
    %521 = vmatprep.subr.bf16.mxu0 0
    %522 = vmatpush1.bf16.msra.mxu0 0
    %523 = vmatprep.subr.bf16.mxu0 0
    %524 = vmatpush1.bf16.msra.mxu0 0
    %525 = vmatprep.subr.bf16.mxu0 0
    %526 = vmatpush1.bf16.msra.mxu0 0
    %527 = vmatprep.subr.bf16.mxu0 0
    %528 = vmatpush1.bf16.msra.mxu0 0
    %529 = vmatprep.mubr.bf16.mxu0 0
    %530 = vmatmul.mubr.bf16.gmra.mrb[0].mxu0 %v495
    %v531 = vpop.f32.mrb[0].mxu0
    %v532 = vadd.f32 %v496, %v531
    %v533 = vpop.f32.mrb[0].mxu0
    %v534 = vpop.f32.mrb[0].mxu0
    %v535 = vpop.f32.mrb[0].mxu0
    %536 = vdwg.mxu0
    %v537 = vadd.f32 %v532, %v160
    %v538 = vmax.f32 %v537, 0.0
    %v539 = vpack.c.bf16 %v538, %v538
    %v540 = vld [vmem:[%s3 + $0x38] sm:$0xff]
    %541 = vmatprep.subr.bf16.mxu0 0
    %542 = vmatpush1.bf16.msra.mxu0 %v217
    %543 = vmatprep.subr.bf16.mxu0 0
    %544 = vmatpush1.bf16.msra.mxu0 %v218
    %545 = vmatprep.subr.bf16.mxu0 0
    %546 = vmatpush1.bf16.msra.mxu0 %v219
    %547 = vmatprep.subr.bf16.mxu0 0
    %548 = vmatpush1.bf16.msra.mxu0 %v220
    %549 = vmatprep.subr.bf16.mxu0 0
    %550 = vmatpush1.bf16.msra.mxu0 %v221
    %551 = vmatprep.subr.bf16.mxu0 0
    %552 = vmatpush1.bf16.msra.mxu0 %v222
    %553 = vmatprep.subr.bf16.mxu0 0
    %554 = vmatpush1.bf16.msra.mxu0 %v223
    %555 = vmatprep.subr.bf16.mxu0 0
    %556 = vmatpush1.bf16.msra.mxu0 %v224
    %557 = vmatprep.subr.bf16.mxu0 0
    %558 = vmatpush1.bf16.msra.mxu0 0
    %559 = vmatprep.subr.bf16.mxu0 0
    %560 = vmatpush1.bf16.msra.mxu0 0
    %561 = vmatprep.subr.bf16.mxu0 0
    %562 = vmatpush1.bf16.msra.mxu0 0
    %563 = vmatprep.subr.bf16.mxu0 0
    %564 = vmatpush1.bf16.msra.mxu0 0
    %565 = vmatprep.subr.bf16.mxu0 0
    %566 = vmatpush1.bf16.msra.mxu0 0
    %567 = vmatprep.subr.bf16.mxu0 0
    %568 = vmatpush1.bf16.msra.mxu0 0
    %569 = vmatprep.subr.bf16.mxu0 0
    %570 = vmatpush1.bf16.msra.mxu0 0
    %571 = vmatprep.subr.bf16.mxu0 0
    %572 = vmatpush1.bf16.msra.mxu0 0
    %573 = vmatprep.mubr.bf16.mxu0 0
    %574 = vmatmul.mubr.bf16.gmra.mrb[0].mxu0 %v539
    %v575 = vpop.f32.mrb[0].mxu0
    %v576 = vadd.f32 %v540, %v575
    %v577 = vpop.f32.mrb[0].mxu0
    %v578 = vpop.f32.mrb[0].mxu0
    %v579 = vpop.f32.mrb[0].mxu0
    %580 = vdwg.mxu0
    %v581 = vadd.f32 %v576, %v165
    %v582 = vmax.f32 %v581, 0.0
    %v583 = vpack.c.bf16 %v582, %v582
    %v584 = vld [vmem:[%s3 + $0x40] sm:$0xff]
    %585 = vmatprep.subr.bf16.mxu0 0
    %586 = vmatpush1.bf16.msra.mxu0 %v217
    %587 = vmatprep.subr.bf16.mxu0 0
    %588 = vmatpush1.bf16.msra.mxu0 %v218
    %589 = vmatprep.subr.bf16.mxu0 0
    %590 = vmatpush1.bf16.msra.mxu0 %v219
    %591 = vmatprep.subr.bf16.mxu0 0
    %592 = vmatpush1.bf16.msra.mxu0 %v220
    %593 = vmatprep.subr.bf16.mxu0 0
    %594 = vmatpush1.bf16.msra.mxu0 %v221
    %595 = vmatprep.subr.bf16.mxu0 0
    %596 = vmatpush1.bf16.msra.mxu0 %v222
    %597 = vmatprep.subr.bf16.mxu0 0
    %598 = vmatpush1.bf16.msra.mxu0 %v223
    %599 = vmatprep.subr.bf16.mxu0 0
    %600 = vmatpush1.bf16.msra.mxu0 %v224
    %601 = vmatprep.subr.bf16.mxu0 0
    %602 = vmatpush1.bf16.msra.mxu0 0
    %603 = vmatprep.subr.bf16.mxu0 0
    %604 = vmatpush1.bf16.msra.mxu0 0
    %605 = vmatprep.subr.bf16.mxu0 0
    %606 = vmatpush1.bf16.msra.mxu0 0
    %607 = vmatprep.subr.bf16.mxu0 0
    %608 = vmatpush1.bf16.msra.mxu0 0
    %609 = vmatprep.subr.bf16.mxu0 0
    %610 = vmatpush1.bf16.msra.mxu0 0
    %611 = vmatprep.subr.bf16.mxu0 0
    %612 = vmatpush1.bf16.msra.mxu0 0
    %613 = vmatprep.subr.bf16.mxu0 0
    %614 = vmatpush1.bf16.msra.mxu0 0
    %615 = vmatprep.subr.bf16.mxu0 0
    %616 = vmatpush1.bf16.msra.mxu0 0
    %617 = vmatprep.mubr.bf16.mxu0 0
    %618 = vmatmul.mubr.bf16.gmra.mrb[0].mxu0 %v583
    %v619 = vpop.f32.mrb[0].mxu0
    %v620 = vadd.f32 %v584, %v619
    %v621 = vpop.f32.mrb[0].mxu0
    %v622 = vpop.f32.mrb[0].mxu0
    %v623 = vpop.f32.mrb[0].mxu0
    %624 = vdwg.mxu0
    %v625 = vmax.f32 %v620, 0.0
    %v626 = vpack.c.bf16 %v625, %v625
    %v627 = vld [vmem:[%s3 + $0x48] sm:$0xff]
    %628 = vmatprep.subr.bf16.mxu0 0
    %629 = vmatpush1.bf16.msra.mxu0 %v217
    %630 = vmatprep.subr.bf16.mxu0 0
    %631 = vmatpush1.bf16.msra.mxu0 %v218
    %632 = vmatprep.subr.bf16.mxu0 0
    %633 = vmatpush1.bf16.msra.mxu0 %v219
    %634 = vmatprep.subr.bf16.mxu0 0
    %635 = vmatpush1.bf16.msra.mxu0 %v220
    %636 = vmatprep.subr.bf16.mxu0 0
    %637 = vmatpush1.bf16.msra.mxu0 %v221
    %638 = vmatprep.subr.bf16.mxu0 0
    %639 = vmatpush1.bf16.msra.mxu0 %v222
    %640 = vmatprep.subr.bf16.mxu0 0
    %641 = vmatpush1.bf16.msra.mxu0 %v223
    %642 = vmatprep.subr.bf16.mxu0 0
    %643 = vmatpush1.bf16.msra.mxu0 %v224
    %644 = vmatprep.subr.bf16.mxu0 0
    %645 = vmatpush1.bf16.msra.mxu0 0
    %646 = vmatprep.subr.bf16.mxu0 0
    %647 = vmatpush1.bf16.msra.mxu0 0
    %648 = vmatprep.subr.bf16.mxu0 0
    %649 = vmatpush1.bf16.msra.mxu0 0
    %650 = vmatprep.subr.bf16.mxu0 0
    %651 = vmatpush1.bf16.msra.mxu0 0
    %652 = vmatprep.subr.bf16.mxu0 0
    %653 = vmatpush1.bf16.msra.mxu0 0
    %654 = vmatprep.subr.bf16.mxu0 0
    %655 = vmatpush1.bf16.msra.mxu0 0
    %656 = vmatprep.subr.bf16.mxu0 0
    %657 = vmatpush1.bf16.msra.mxu0 0
    %658 = vmatprep.subr.bf16.mxu0 0
    %659 = vmatpush1.bf16.msra.mxu0 0
    %660 = vmatprep.mubr.bf16.mxu0 0
    %661 = vmatmul.mubr.bf16.gmra.mrb[0].mxu0 %v626
    %v662 = vpop.f32.mrb[0].mxu0
    %v663 = vadd.f32 %v627, %v662
    %v664 = vpop.f32.mrb[0].mxu0
    %v665 = vpop.f32.mrb[0].mxu0
    %v666 = vpop.f32.mrb[0].mxu0
    %667 = vdwg.mxu0
    %v668 = vmax.f32 %v663, 0.0
    %v669 = vld [vmem:[%s4] sm:$0xff]
    %v670 = vld [vmem:[%s4 + $0x8] sm:$0xff]
    %v671 = vld [vmem:[%s4 + $0x10] sm:$0xff]
    %v672 = vld [vmem:[%s4 + $0x18] sm:$0xff]
    %v673 = vld [vmem:[%s4 + $0x20] sm:$0xff]
    %v674 = vld [vmem:[%s4 + $0x28] sm:$0xff]
    %v675 = vld [vmem:[%s4 + $0x30] sm:$0xff]
    %v676 = vld [vmem:[%s4 + $0x38] sm:$0xff]
    %v677 = vld [vmem:[%s4 + $0x40] sm:$0xff]
    %v678 = vld [vmem:[%s4 + $0x48] sm:$0xff]
    %v679 = vld [vmem:[%s4 + $0x50] sm:$0xff]
    %v680 = vld [vmem:[%s4 + $0x58] sm:$0xff]
    %v681 = vld [vmem:[%s4 + $0x60] sm:$0xff]
    %v682 = vld [vmem:[%s4 + $0x68] sm:$0xff]
    %v683 = vld [vmem:[%s4 + $0x70] sm:$0xff]
    %v684 = vld [vmem:[%s4 + $0x78] sm:$0xff]
    %v685 = vld [vmem:[%s5] sm:$0x1]
    %v687 = vlaneseq
    %v688 = vshrl.u32 %v687, 7
    %v689 = vsub.s32 0, %v688
    %v690 = vrot.slane %v685, %v689
    %692 = vmatprep.subr.mxu0 0.0
    %693 = vmatpush1.msra.mxu0 %v669
    %694 = vmatprep.subr.mxu0 0.0
    %695 = vmatpush1.msra.mxu0 %v670
    %696 = vmatprep.subr.mxu0 0.0
    %697 = vmatpush1.msra.mxu0 %v671
    %698 = vmatprep.subr.mxu0 0.0
    %699 = vmatpush1.msra.mxu0 %v672
    %700 = vmatprep.subr.mxu0 0.0
    %701 = vmatpush1.msra.mxu0 %v673
    %702 = vmatprep.subr.mxu0 0.0
    %703 = vmatpush1.msra.mxu0 %v674
    %704 = vmatprep.subr.mxu0 0.0
    %705 = vmatpush1.msra.mxu0 %v675
    %706 = vmatprep.subr.mxu0 0.0
    %707 = vmatpush1.msra.mxu0 %v676
    %708 = vmatprep.subr.mxu0 0.0
    %709 = vmatpush1.msra.mxu0 %v677
    %710 = vmatprep.subr.mxu0 0.0
    %711 = vmatpush1.msra.mxu0 %v678
    %712 = vmatprep.subr.mxu0 0.0
    %713 = vmatpush1.msra.mxu0 %v679
    %714 = vmatprep.subr.mxu0 0.0
    %715 = vmatpush1.msra.mxu0 %v680
    %716 = vmatprep.subr.mxu0 0.0
    %717 = vmatpush1.msra.mxu0 %v681
    %718 = vmatprep.subr.mxu0 0.0
    %719 = vmatpush1.msra.mxu0 %v682
    %720 = vmatprep.subr.mxu0 0.0
    %721 = vmatpush1.msra.mxu0 %v683
    %722 = vmatprep.subr.mxu0 0.0
    %723 = vmatpush1.msra.mxu0 %v684
    %724 = vmatprep.subr.mxu0 0.0
    %725 = vmatpush1.msra.mxu0 0.0
    %726 = vmatprep.subr.mxu0 0.0
    %727 = vmatpush1.msra.mxu0 0.0
    %728 = vmatprep.subr.mxu0 0.0
    %729 = vmatpush1.msra.mxu0 0.0
    %730 = vmatprep.subr.mxu0 0.0
    %731 = vmatpush1.msra.mxu0 0.0
    %732 = vmatprep.subr.mxu0 0.0
    %733 = vmatpush1.msra.mxu0 0.0
    %734 = vmatprep.subr.mxu0 0.0
    %735 = vmatpush1.msra.mxu0 0.0
    %736 = vmatprep.subr.mxu0 0.0
    %737 = vmatpush1.msra.mxu0 0.0
    %738 = vmatprep.subr.mxu0 0.0
    %739 = vmatpush1.msra.mxu0 0.0
    %740 = vmatprep.subr.mxu0 0.0
    %741 = vmatpush1.msra.mxu0 0.0
    %742 = vmatprep.subr.mxu0 0.0
    %743 = vmatpush1.msra.mxu0 0.0
    %744 = vmatprep.subr.mxu0 0.0
    %745 = vmatpush1.msra.mxu0 0.0
    %746 = vmatprep.subr.mxu0 0.0
    %747 = vmatpush1.msra.mxu0 0.0
    %748 = vmatprep.subr.mxu0 0.0
    %749 = vmatpush1.msra.mxu0 0.0
    %750 = vmatprep.subr.mxu0 0.0
    %751 = vmatpush1.msra.mxu0 0.0
    %752 = vmatprep.subr.mxu0 0.0
    %753 = vmatpush1.msra.mxu0 0.0
    %754 = vmatprep.subr.mxu0 0.0
    %755 = vmatpush1.msra.mxu0 0.0
    %756 = vmatprep.mubr.f32.mxu0 0.0
    %757 = vmatmul.mubr.f32.gmra.mrb[0].mxu0 %v668
    %v758 = vpop.f32.mrb[0].mxu0
    %v759 = vadd.f32 %v690, %v758
    %v760 = vpop.f32.mrb[0].mxu0
    %761 = vdwg.mxu0
    %vm762 = vcmask 523264
    %763 = vst.msk [vmem:[#allocation2] sm:$0xff] %vm762, %v759
    // Predicated region
    $region26: #{tpu_custom_call.1} parent=1 // pred_check
      _
    $region27: #{tpu_custom_call.1} parent=1 // pred_check_branch
      %765 = sbr.rel (0) target = $region29
    $region28: #{tpu_custom_call.1} parent=1 // pred_region
      %s767 = ssub.s32 128, 128
      %768 = vsyncadd [#allocation3], %s767
      %s770 = sshll.u32 [#allocation2], 4
      %s771 = int_to_ptr.vmem [resolvable:$true] %s770
      %773 = dma.vmem_to_hbm [thread:$0]  %s771, 128, %s6, [#allocation3]
    $region29: #{tpu_custom_call.1} parent=1 // pred_fallthru
      _
    // Predicated region
    $region30: #{tpu_custom_call.1} parent=1 // pred_check
      _
    $region31: #{tpu_custom_call.1} parent=1 // pred_check_branch
      %775 = sbr.rel (0) target = $region33
    $region32: #{tpu_custom_call.1} parent=1 // pred_region
      %776 = dma.done [#allocation3], 128
    $region33: #{tpu_custom_call.1} parent=1 // pred_fallthru
      _
    %777 = vsyncpa [#allocation3], 1

</llo_original>
